<compile_context>
chip_gen: v5e
topology: v5e:2x2
jax: 0.10.0
libtpu: 0.0.40
codegen_flags: <defaults>
</compile_context>

<pallas_src>
import functools
from typing import NamedTuple

import jax
import jax.numpy as jnp
from jax.experimental import pallas as pl
from jax.experimental.pallas import tpu as pltpu


def _round_up(x: int, m: int) -> int:
    return (x + m - 1) // m * m


class Plan(NamedTuple):
    small: bool
    B: int
    D_in: int
    D_out: int
    tm: int
    tn: int
    tk: int
    Mp: int
    Np: int
    Kp: int
    vmem_limit: int


def make_plan(B: int, D_in: int, D_out: int, *, mxu_bf16: bool = False) -> Plan:
    """Static tile plan; compute once per (shape, dtype-mode)."""
    # Small-problem fast path: whole problem comfortably fits as a single VMEM block.
    small = (
        B <= 512
        and D_in <= 2048
        and D_out <= 2048
        and (B * D_in + D_in * D_out + B * D_out) <= (2 << 20)  # <= ~8 MiB f32
    )
    if small:
        return Plan(True, B, D_in, D_out, B, D_out, D_in, B, D_out, D_in, 0)

    in_bytes = 2 if mxu_bf16 else 4
    # Lane-dense tiles that use a real fraction of VMEM: up to 512x512x1024 f32
    # (~10.5 MiB double-buffered); 2x deeper K tile in bf16.
    tm = min(_round_up(B, 8), 512)
    tn = min(_round_up(D_out, 128), 512)
    tk = min(_round_up(D_in, 128), 2048 if mxu_bf16 else 1024)

    Mp = _round_up(B, tm)
    Np = _round_up(D_out, tn)
    Kp = _round_up(D_in, tk)

    # Megacore (v7x): make sure the parallel axes have >= 2 grid points to shard.
    if (Mp // tm) * (Np // tn) == 1:
        if tn >= 256:
            tn //= 2
            Np = _round_up(D_out, tn)
        elif tm >= 16 and tm % 16 == 0:
            tm //= 2
            Mp = _round_up(B, tm)

    # Double-buffered inputs + double-buffered f32 output block, 1.5x headroom,
    # capped at 48 MiB so the plan also fits v7x's 64 MiB physical VMEM.
    working = 2 * (tm * tk + tk * tn + tn) * in_bytes + 2 * tm * tn * 4
    vmem_limit = min(max(int(working * 1.5), 32 << 20), 48 << 20)
    return Plan(False, B, D_in, D_out, tm, tn, tk, Mp, Np, Kp, vmem_limit)


def prepare_params(weight, bias, plan: Plan, *, mxu_bf16: bool = False):
    """One-time weight/bias prep (transpose + pad + optional bf16 cast). NOT per-call."""
    D_out, D_in = weight.shape
    assert (D_in, D_out) == (plan.D_in, plan.D_out)
    # Pre-transpose to (K, N): kernel contracts (tm, tk) @ (tk, tn), no in-kernel transpose.
    wt = weight.T
    if (plan.Kp, plan.Np) != (D_in, D_out):
        wt = jnp.pad(wt, ((0, plan.Kp - D_in), (0, plan.Np - D_out)))
    if mxu_bf16:
        wt = wt.astype(jnp.bfloat16)  # cast once; kernel streams bf16 bytes
    bp = bias.reshape(1, D_out).astype(jnp.float32)
    if plan.Np != D_out:
        bp = jnp.pad(bp, ((0, 0), (0, plan.Np - D_out)))
    return wt, bp


def _make_small_kernel(precision):
    def kernel(x_ref, w_ref, b_ref, o_ref):
        acc = jax.lax.dot_general(
            x_ref[...], w_ref[...],
            dimension_numbers=(((1,), (0,)), ((), ())),
            preferred_element_type=jnp.float32,
            precision=precision,
        )
        o_ref[...] = jnp.maximum(acc + b_ref[...], 0.0).astype(o_ref.dtype)
    return kernel


def _make_tiled_kernel(precision):
    def kernel(x_ref, w_ref, b_ref, o_ref):
        k = pl.program_id(2)

        @pl.when(k == 0)
        def _():
            o_ref[...] = jnp.zeros_like(o_ref)

        # Accumulate directly into the resident f32 output block (no acc scratch).
        o_ref[...] += jax.lax.dot_general(
            x_ref[...], w_ref[...],
            dimension_numbers=(((1,), (0,)), ((), ())),
            preferred_element_type=jnp.float32,
            precision=precision,
        )

        @pl.when(k == pl.num_programs(2) - 1)
        def _():
            o_ref[...] = jnp.maximum(o_ref[...] + b_ref[...], 0.0)
    return kernel


def clientnet_forward(x, w_prepped, b_prepped, *, plan: Plan, mxu_bf16: bool = False):
    """x: (B, D_in); w_prepped: (Kp, Np) pre-transposed/padded; b_prepped: (1, Np)."""
    B, D_in = x.shape
    assert (B, D_in) == (plan.B, plan.D_in), "plan was built for different shapes"
    precision = (jax.lax.Precision.DEFAULT if mxu_bf16
                 else jax.lax.Precision.HIGHEST)
    if mxu_bf16:
        x = x.astype(jnp.bfloat16)  # cast upstream so the kernel DMAs bf16 bytes

    if plan.small:
        # Single-block fast path: no grid, no scratch, no pl.when.
        return pl.pallas_call(
            _make_small_kernel(precision),
            out_shape=jax.ShapeDtypeStruct((B, plan.D_out), jnp.float32),
        )(x, w_prepped, b_prepped)

    tm, tn, tk = plan.tm, plan.tn, plan.tk
    Mp, Np, Kp = plan.Mp, plan.Np, plan.Kp
    if (Mp, Kp) != (B, D_in):
        # TODO(synk): for very large unaligned activations, fold this pad into the
        # producer or handle the ragged edge in-kernel with masked stores.
        x = jnp.pad(x, ((0, Mp - B), (0, Kp - D_in)))

    grid = (Mp // tm, Np // tn, Kp // tk)
    x_bytes = x.dtype.itemsize
    w_bytes = w_prepped.dtype.itemsize
    out = pl.pallas_call(
        _make_tiled_kernel(precision),
        out_shape=jax.ShapeDtypeStruct((Mp, Np), jnp.float32),
        grid=grid,
        in_specs=[
            pl.BlockSpec((tm, tk), lambda i, j, k: (i, k)),   # activations (M, K)
            pl.BlockSpec((tk, tn), lambda i, j, k: (k, j)),   # weight, pre-transposed (K, N)
            pl.BlockSpec((1, tn), lambda i, j, k: (0, j)),    # bias
        ],
        out_specs=pl.BlockSpec((tm, tn), lambda i, j, k: (i, j)),
        compiler_params=pltpu.CompilerParams(
            dimension_semantics=("parallel", "parallel", "arbitrary"),
            vmem_limit_bytes=plan.vmem_limit,
        ),
        cost_estimate=pl.CostEstimate(
            flops=2 * Mp * Np * Kp,
            transcendentals=0,
            # Account for cross-grid re-reads: x is read Np/tn times, W is read Mp/tm times.
            bytes_accessed=(Mp * Kp * x_bytes * grid[1]
                            + Kp * Np * w_bytes * grid[0]
                            + Np * 4 * grid[0]
                            + Mp * Np * 4),
        ),
    )(x, w_prepped, b_prepped)

    if (Mp, Np) != (B, plan.D_out):
        out = out[:B, :plan.D_out]
    return out


if __name__ == "__main__":
    # --- 1) Actual ClientNet (a9a-scale) sizes: single-block fast path. ---
    n_dim = 32
    batch = 8

    key = jax.random.PRNGKey(0)
    kx, kw, kb = jax.random.split(key, 3)
    x = jax.random.normal(kx, (batch, n_dim), dtype=jnp.float32)
    bound = 1.0 / jnp.sqrt(jnp.float32(n_dim))
    weight = jax.random.uniform(kw, (n_dim, n_dim), dtype=jnp.float32,
                                minval=-bound, maxval=bound)   # PyTorch (out, in) layout
    bias = jax.random.uniform(kb, (n_dim,), dtype=jnp.float32,
                              minval=-bound, maxval=bound)

    plan = make_plan(batch, n_dim, n_dim, mxu_bf16=False)
    wp, bp = prepare_params(weight, bias, plan, mxu_bf16=False)   # one-time param prep
    fwd = jax.jit(functools.partial(clientnet_forward, plan=plan, mxu_bf16=False))
    out = jax.block_until_ready(fwd(x, wp, bp))

    ref = jnp.maximum(
        jnp.dot(x, weight.T, precision=jax.lax.Precision.HIGHEST) + bias, 0.0)
    assert out.shape == (batch, n_dim)
    assert jnp.allclose(out, ref, atol=2e-3, rtol=2e-3), \
        float(jnp.max(jnp.abs(out - ref)))

    # --- 2) Larger shape to exercise the tiled / accumulating path. ---
    B2, D2 = 1024, 1536
    kx2, kw2, kb2 = jax.random.split(jax.random.PRNGKey(1), 3)
    x2 = jax.random.normal(kx2, (B2, D2), dtype=jnp.float32)
    bound2 = 1.0 / jnp.sqrt(jnp.float32(D2))
    w2 = jax.random.uniform(kw2, (D2, D2), dtype=jnp.float32,
                            minval=-bound2, maxval=bound2)
    b2 = jax.random.uniform(kb2, (D2,), dtype=jnp.float32,
                            minval=-bound2, maxval=bound2)

    plan2 = make_plan(B2, D2, D2, mxu_bf16=False)
    assert not plan2.small
    wp2, bp2 = prepare_params(w2, b2, plan2, mxu_bf16=False)
    fwd2 = jax.jit(functools.partial(clientnet_forward, plan=plan2, mxu_bf16=False))
    out2 = jax.block_until_ready(fwd2(x2, wp2, bp2))

    ref2 = jnp.maximum(
        jnp.dot(x2, w2.T, precision=jax.lax.Precision.HIGHEST) + b2, 0.0)
    assert out2.shape == (B2, D2)
    assert jnp.allclose(out2, ref2, atol=2e-3, rtol=2e-3), \
        float(jnp.max(jnp.abs(out2 - ref2)))

    print("KERNEL_OK")
</pallas_src>

<mosaic_0001>
module attributes {stable_mosaic.version = 11 : i64} {
  func.func @kernel(%arg0: memref<8x32xf32, #tpu.memory_space<vmem>>, %arg1: memref<32x32xf32, #tpu.memory_space<vmem>>, %arg2: memref<1x32xf32, #tpu.memory_space<vmem>>, %arg3: memref<8x32xf32, #tpu.memory_space<vmem>>) attributes {dimension_semantics = [], scalar_prefetch = 0 : i64, scratch_operands = 0 : i64, tpu.core_type = #tpu.core_type<tc>} {
    %c0 = arith.constant 0 : index
    %c0_0 = arith.constant 0 : index
    %0 = vector.load %arg0[%c0, %c0_0] : memref<8x32xf32, #tpu.memory_space<vmem>>, vector<8x32xf32>
    %c0_1 = arith.constant 0 : index
    %c0_2 = arith.constant 0 : index
    %1 = vector.load %arg1[%c0_1, %c0_2] : memref<32x32xf32, #tpu.memory_space<vmem>>, vector<32x32xf32>
    %cst = arith.constant dense<0.000000e+00> : vector<8x32xf32>
    %2 = tpu.matmul %0, %1, %cst {dimension_numbers = #tpu.dot_dimension_numbers<[1], [0], [0], [1], [0, 0, 1, 1], [], []>, precision = #tpu.contract_precision<fp32>} : vector<8x32xf32>, vector<32x32xf32>, vector<8x32xf32> -> vector<8x32xf32>
    %c0_3 = arith.constant 0 : index
    %c0_4 = arith.constant 0 : index
    %3 = vector.load %arg2[%c0_3, %c0_4] : memref<1x32xf32, #tpu.memory_space<vmem>>, vector<1x32xf32>
    %4 = vector.broadcast %3 : vector<1x32xf32> to vector<8x32xf32>
    %5 = arith.addf %2, %4 : vector<8x32xf32>
    %cst_5 = arith.constant 0.000000e+00 : f32
    %6 = vector.broadcast %cst_5 : f32 to vector<8x32xf32>
    %7 = arith.maximumf %5, %6 : vector<8x32xf32>
    %c0_6 = arith.constant 0 : index
    %c0_7 = arith.constant 0 : index
    %8 = vector.load %arg3[%c0_6, %c0_7] : memref<8x32xf32, #tpu.memory_space<vmem>>, vector<8x32xf32>
    tpu.vector_store %arg3[%c0_6, %c0_7], %7 {strides = array<i32>} : memref<8x32xf32, #tpu.memory_space<vmem>>, vector<8x32xf32>,
    return
  }
}

</mosaic_0001>

<llo_original>
// kernel: clientnet_forward.1
$region0: #{clientnet_forward.1}
  #allocation0 [shape = 'u32[]', space=smem, size = 0x4, offset = 0x4, fixed_abs, tag = 'smem constant byte address 0x4 - core index']
  #allocation1 [shape = 'u32[72,128]{1,0:T(1,128)}', space=vmem, size = 0x9000, scoped, tag = 'internal scratch']
  %s0 = inlined_call_operand.hbm [shape: f32[8,32], index: 0, kind: input, shape index: {}]
  %s1 = inlined_call_operand.hbm [shape: f32[32,32], index: 1, kind: input, shape index: {}]
  %s2 = inlined_call_operand.vmem [shape: f32[1,32], index: 2, kind: input, shape index: {}]
  %s3 = inlined_call_operand.hbm [shape: f32[8,32], index: 3, kind: output, shape index: {}]
  %s4 = sld [smem:[#allocation0]]
  $region30: #{clientnet_forward.1} parent=0
    _
  %s6 = ssub.s32 1, %s4
  %s7 = scalar_select 0, %s6, %s4
  $region1: #{clientnet_forward.1} parent=0
    #allocation2 [shape = 'u8[4096]{0}', space=vmem, size = 0x1000, scoped, tag = 'input window, operand 0, single buffered']
    #allocation3 [shape = 's32[1]{0}', space=sflag, size = 0x4, scoped, tag = 'scoped memory for clientnet_forward.1']
    #allocation4 [shape = 's32[1]{0}', space=sflag, size = 0x4, scoped, tag = 'scoped memory for clientnet_forward.1']
    #allocation5 [shape = 'u8[16384]{0}', space=vmem, size = 0x4000, scoped, tag = 'input window, operand 1, single buffered']
    #allocation6 [shape = 's32[1]{0}', space=sflag, size = 0x4, scoped, tag = 'scoped memory for clientnet_forward.1']
    #allocation7 [shape = 'u8[4096]{0}', space=vmem, size = 0x1000, scoped, tag = 'output window, operand 0, single buffered']
    %8 = vsyncpa [#allocation3], 0
    %9 = vsyncpa [#allocation6], 0
    %10 = vsyncpa [#allocation4], 0
    // Predicated region
    $region2: #{clientnet_forward.1} parent=1 // pred_check
      _
    $region3: #{clientnet_forward.1} parent=1 // pred_check_branch
      %12 = sbr.rel (0) target = $region5
    $region4: #{clientnet_forward.1} parent=1 // pred_region
      %14 = vsyncadd [#allocation3], 0
      %s16 = sshll.u32 %s0, 4
      %s17 = int_to_ptr.hbm [resolvable:$true] %s16
      %s18 = sshll.u32 [#allocation2], 4
      %s19 = int_to_ptr.vmem [resolvable:$true] %s18
      %21 = dma.hbm_to_vmem [thread:$0]  %s17, 128, %s19, [#allocation3]
    $region5: #{clientnet_forward.1} parent=1 // pred_fallthru
      _
    // Predicated region
    $region6: #{clientnet_forward.1} parent=1 // pred_check
      _
    $region7: #{clientnet_forward.1} parent=1 // pred_check_branch
      %23 = sbr.rel (0) target = $region9
    $region8: #{clientnet_forward.1} parent=1 // pred_region
      %25 = vsyncadd [#allocation6], 0
      %s26 = sshll.u32 %s1, 4
      %s27 = int_to_ptr.hbm [resolvable:$true] %s26
      %s28 = sshll.u32 [#allocation5], 4
      %s29 = int_to_ptr.vmem [resolvable:$true] %s28
      %34 = dma.hbm_to_vmem [thread:$0]  %s27, 512, %s29, [#allocation6], 128, 128, 8
    $region9: #{clientnet_forward.1} parent=1 // pred_fallthru
      _
    // Predicated region
    $region10: #{clientnet_forward.1} parent=1 // pred_check
      _
    $region11: #{clientnet_forward.1} parent=1 // pred_check_branch
      %36 = sbr.rel (0) target = $region13
    $region12: #{clientnet_forward.1} parent=1 // pred_region
      _
    $region13: #{clientnet_forward.1} parent=1 // pred_fallthru
      _
    // Predicated region
    $region14: #{clientnet_forward.1} parent=1 // pred_check
      _
    $region15: #{clientnet_forward.1} parent=1 // pred_check_branch
      %38 = sbr.rel (0) target = $region17
    $region16: #{clientnet_forward.1} parent=1 // pred_region
      %40 = dma.done [#allocation3], 128
    $region17: #{clientnet_forward.1} parent=1 // pred_fallthru
      _
    // Predicated region
    $region18: #{clientnet_forward.1} parent=1 // pred_check
      _
    $region19: #{clientnet_forward.1} parent=1 // pred_check_branch
      %42 = sbr.rel (0) target = $region21
    $region20: #{clientnet_forward.1} parent=1 // pred_region
      %44 = dma.done [#allocation6], 512
    $region21: #{clientnet_forward.1} parent=1 // pred_fallthru
      _
    %v45 = vld [vmem:[#allocation2] sm:$0xff]
    %v46 = vld [vmem:[#allocation5] sm:$0xff]
    %v47 = vld [vmem:[#allocation5 + $0x8] sm:$0xff]
    %v48 = vld [vmem:[#allocation5 + $0x10] sm:$0xff]
    %v49 = vld [vmem:[#allocation5 + $0x18] sm:$0xff]
    %v50 = vld [vmem:[%s2] sm:$0x1]
    %v52 = vperm.slane %v50, 0
    %vm54 = vcmask 261120
    %v56 = vsel %vm54, %v45, 0
    %58 = vmatpush.msra.mxu0 0.0
    %59 = vmatpush.msra.mxu0 0.0
    %60 = vmatpush.msra.mxu0 0.0
    %61 = vmatpush.msra.mxu0 0.0
    %62 = vmatpush.msra.mxu0 0.0
    %63 = vmatpush.msra.mxu0 0.0
    %64 = vmatpush.msra.mxu0 0.0
    %65 = vmatpush.msra.mxu0 0.0
    %66 = vmatpush.msra.mxu0 0.0
    %67 = vmatpush.msra.mxu0 0.0
    %68 = vmatpush.msra.mxu0 0.0
    %69 = vmatpush.msra.mxu0 0.0
    %v70 = vand.u32 %v49, 4294901760
    %71 = vmatpush.msra.mxu0 %v70
    %v72 = vand.u32 %v48, 4294901760
    %73 = vmatpush.msra.mxu0 %v72
    %v74 = vand.u32 %v47, 4294901760
    %75 = vmatpush.msra.mxu0 %v74
    %v76 = vand.u32 %v46, 4294901760
    %77 = vmatpush.msra.mxu0 %v76
    %v78 = vand.u32 %v56, 4294901760
    %v79 = vsub.f32 %v56, %v78
    %v80 = vand.u32 %v79, 4294901760
    %v81 = vsub.f32 %v79, %v80
    %v82 = vand.u32 %v81, 4294901760
    %83 = vmatmul.f32.gmra.mxu0 %v82
    %v84 = vpop.f32.mrf.mxu0
    %v85 = vadd.f32 %v52, %v84
    %86 = vdwg.mxu0
    %87 = vmatpush.msra.mxu0 0.0
    %88 = vmatpush.msra.mxu0 0.0
    %89 = vmatpush.msra.mxu0 0.0
    %90 = vmatpush.msra.mxu0 0.0
    %91 = vmatpush.msra.mxu0 0.0
    %92 = vmatpush.msra.mxu0 0.0
    %93 = vmatpush.msra.mxu0 0.0
    %94 = vmatpush.msra.mxu0 0.0
    %95 = vmatpush.msra.mxu0 0.0
    %96 = vmatpush.msra.mxu0 0.0
    %97 = vmatpush.msra.mxu0 0.0
    %98 = vmatpush.msra.mxu0 0.0
    %v99 = vand.u32 %v49, 4294901760
    %v100 = vsub.f32 %v49, %v99
    %v101 = vand.u32 %v100, 4294901760
    %v102 = vsub.f32 %v100, %v101
    %v103 = vand.u32 %v102, 4294901760
    %104 = vmatpush.msra.mxu0 %v103
    %v105 = vand.u32 %v48, 4294901760
    %v106 = vsub.f32 %v48, %v105
    %v107 = vand.u32 %v106, 4294901760
    %v108 = vsub.f32 %v106, %v107
    %v109 = vand.u32 %v108, 4294901760
    %110 = vmatpush.msra.mxu0 %v109
    %v111 = vand.u32 %v47, 4294901760
    %v112 = vsub.f32 %v47, %v111
    %v113 = vand.u32 %v112, 4294901760
    %v114 = vsub.f32 %v112, %v113
    %v115 = vand.u32 %v114, 4294901760
    %116 = vmatpush.msra.mxu0 %v115
    %v117 = vand.u32 %v46, 4294901760
    %v118 = vsub.f32 %v46, %v117
    %v119 = vand.u32 %v118, 4294901760
    %v120 = vsub.f32 %v118, %v119
    %v121 = vand.u32 %v120, 4294901760
    %122 = vmatpush.msra.mxu0 %v121
    %v123 = vand.u32 %v56, 4294901760
    %124 = vmatmul.f32.gmra.mxu0 %v123
    %v125 = vpop.f32.mrf.mxu0
    %v126 = vadd.f32 %v85, %v125
    %127 = vdwg.mxu0
    %128 = vmatpush.msra.mxu0 0.0
    %129 = vmatpush.msra.mxu0 0.0
    %130 = vmatpush.msra.mxu0 0.0
    %131 = vmatpush.msra.mxu0 0.0
    %132 = vmatpush.msra.mxu0 0.0
    %133 = vmatpush.msra.mxu0 0.0
    %134 = vmatpush.msra.mxu0 0.0
    %135 = vmatpush.msra.mxu0 0.0
    %136 = vmatpush.msra.mxu0 0.0
    %137 = vmatpush.msra.mxu0 0.0
    %138 = vmatpush.msra.mxu0 0.0
    %139 = vmatpush.msra.mxu0 0.0
    %v140 = vand.u32 %v49, 4294901760
    %v141 = vsub.f32 %v49, %v140
    %142 = vmatpush.msra.mxu0 %v141
    %v143 = vand.u32 %v48, 4294901760
    %v144 = vsub.f32 %v48, %v143
    %145 = vmatpush.msra.mxu0 %v144
    %v146 = vand.u32 %v47, 4294901760
    %v147 = vsub.f32 %v47, %v146
    %148 = vmatpush.msra.mxu0 %v147
    %v149 = vand.u32 %v46, 4294901760
    %v150 = vsub.f32 %v46, %v149
    %151 = vmatpush.msra.mxu0 %v150
    %v152 = vand.u32 %v56, 4294901760
    %v153 = vsub.f32 %v56, %v152
    %154 = vmatmul.f32.gmra.mxu0 %v153
    %v155 = vpop.f32.mrf.mxu0
    %v156 = vadd.f32 %v126, %v155
    %157 = vdwg.mxu0
    %158 = vmatpush.msra.mxu0 0.0
    %159 = vmatpush.msra.mxu0 0.0
    %160 = vmatpush.msra.mxu0 0.0
    %161 = vmatpush.msra.mxu0 0.0
    %162 = vmatpush.msra.mxu0 0.0
    %163 = vmatpush.msra.mxu0 0.0
    %164 = vmatpush.msra.mxu0 0.0
    %165 = vmatpush.msra.mxu0 0.0
    %166 = vmatpush.msra.mxu0 0.0
    %167 = vmatpush.msra.mxu0 0.0
    %168 = vmatpush.msra.mxu0 0.0
    %169 = vmatpush.msra.mxu0 0.0
    %v170 = vand.u32 %v49, 4294901760
    %171 = vmatpush.msra.mxu0 %v170
    %v172 = vand.u32 %v48, 4294901760
    %173 = vmatpush.msra.mxu0 %v172
    %v174 = vand.u32 %v47, 4294901760
    %175 = vmatpush.msra.mxu0 %v174
    %v176 = vand.u32 %v46, 4294901760
    %177 = vmatpush.msra.mxu0 %v176
    %v178 = vand.u32 %v56, 4294901760
    %v179 = vsub.f32 %v56, %v178
    %v180 = vand.u32 %v179, 4294901760
    %181 = vmatmul.f32.gmra.mxu0 %v180
    %v182 = vpop.f32.mrf.mxu0
    %v183 = vadd.f32 %v156, %v182
    %184 = vdwg.mxu0
    %185 = vmatpush.msra.mxu0 0.0
    %186 = vmatpush.msra.mxu0 0.0
    %187 = vmatpush.msra.mxu0 0.0
    %188 = vmatpush.msra.mxu0 0.0
    %189 = vmatpush.msra.mxu0 0.0
    %190 = vmatpush.msra.mxu0 0.0
    %191 = vmatpush.msra.mxu0 0.0
    %192 = vmatpush.msra.mxu0 0.0
    %193 = vmatpush.msra.mxu0 0.0
    %194 = vmatpush.msra.mxu0 0.0
    %195 = vmatpush.msra.mxu0 0.0
    %196 = vmatpush.msra.mxu0 0.0
    %v197 = vand.u32 %v49, 4294901760
    %v198 = vsub.f32 %v49, %v197
    %v199 = vand.u32 %v198, 4294901760
    %200 = vmatpush.msra.mxu0 %v199
    %v201 = vand.u32 %v48, 4294901760
    %v202 = vsub.f32 %v48, %v201
    %v203 = vand.u32 %v202, 4294901760
    %204 = vmatpush.msra.mxu0 %v203
    %v205 = vand.u32 %v47, 4294901760
    %v206 = vsub.f32 %v47, %v205
    %v207 = vand.u32 %v206, 4294901760
    %208 = vmatpush.msra.mxu0 %v207
    %v209 = vand.u32 %v46, 4294901760
    %v210 = vsub.f32 %v46, %v209
    %v211 = vand.u32 %v210, 4294901760
    %212 = vmatpush.msra.mxu0 %v211
    %v213 = vand.u32 %v56, 4294901760
    %214 = vmatmul.f32.gmra.mxu0 %v213
    %v215 = vpop.f32.mrf.mxu0
    %v216 = vadd.f32 %v183, %v215
    %217 = vdwg.mxu0
    %218 = vmatpush.msra.mxu0 0.0
    %219 = vmatpush.msra.mxu0 0.0
    %220 = vmatpush.msra.mxu0 0.0
    %221 = vmatpush.msra.mxu0 0.0
    %222 = vmatpush.msra.mxu0 0.0
    %223 = vmatpush.msra.mxu0 0.0
    %224 = vmatpush.msra.mxu0 0.0
    %225 = vmatpush.msra.mxu0 0.0
    %226 = vmatpush.msra.mxu0 0.0
    %227 = vmatpush.msra.mxu0 0.0
    %228 = vmatpush.msra.mxu0 0.0
    %229 = vmatpush.msra.mxu0 0.0
    %v230 = vand.u32 %v49, 4294901760
    %231 = vmatpush.msra.mxu0 %v230
    %v232 = vand.u32 %v48, 4294901760
    %233 = vmatpush.msra.mxu0 %v232
    %v234 = vand.u32 %v47, 4294901760
    %235 = vmatpush.msra.mxu0 %v234
    %v236 = vand.u32 %v46, 4294901760
    %237 = vmatpush.msra.mxu0 %v236
    %v238 = vand.u32 %v56, 4294901760
    %239 = vmatmul.f32.gmra.mxu0 %v238
    %v240 = vpop.f32.mrf.mxu0
    %v241 = vadd.f32 %v216, %v240
    %242 = vdwg.mxu0
    %v243 = vmax.f32 %v241, 0.0
    %244 = vst.msk [vmem:[#allocation7] sm:$0xff] %vm54, %v243
    // Predicated region
    $region22: #{clientnet_forward.1} parent=1 // pred_check
      _
    $region23: #{clientnet_forward.1} parent=1 // pred_check_branch
      %246 = sbr.rel (0) target = $region25
    $region24: #{clientnet_forward.1} parent=1 // pred_region
      %248 = vsyncadd [#allocation4], 0
      %s250 = sshll.u32 [#allocation7], 4
      %s251 = int_to_ptr.vmem [resolvable:$true] %s250
      %s252 = sshll.u32 %s3, 4
      %s253 = int_to_ptr.hbm [resolvable:$true] %s252
      %255 = dma.vmem_to_hbm [thread:$0]  %s251, 128, %s253, [#allocation4]
    $region25: #{clientnet_forward.1} parent=1 // pred_fallthru
      _
    // Predicated region
    $region26: #{clientnet_forward.1} parent=1 // pred_check
      _
    $region27: #{clientnet_forward.1} parent=1 // pred_check_branch
      %257 = sbr.rel (0) target = $region29
    $region28: #{clientnet_forward.1} parent=1 // pred_region
      %259 = dma.done [#allocation4], 128
    $region29: #{clientnet_forward.1} parent=1 // pred_fallthru
      _
    %260 = vsyncpa [#allocation3], 1
    %261 = vsyncpa [#allocation6], 1
    %262 = vsyncpa [#allocation4], 1

</llo_original>
